<compile_context>
chip_gen: v5e
topology: v5e:2x2
jax: 0.10.0
libtpu: 0.0.40
codegen_flags: <defaults>
</compile_context>

<pallas_src>
import functools

import jax
import jax.numpy as jnp
from jax.experimental import pallas as pl
from jax.experimental.pallas import tpu as pltpu


def _round_up(x, m):
    return ((x + m - 1) // m) * m


def _focal_loss_kernel(x_ref, t_ref, out_ref, acc_ref, *,
                       alpha, gamma, n_samples, tile_n, tiles_per_chunk):
    i = pl.program_id(0)          # parallel chunk (megacore axis on v7x)
    j = pl.program_id(1)          # tile within the chunk (sequential reduction)

    @pl.when(j == 0)
    def _():
        acc_ref[...] = jnp.zeros_like(acc_ref)

    x = x_ref[...].astype(jnp.float32)      # (C, TILE_N) logits, class-major
    t = t_ref[...].astype(jnp.int32)        # (1, TILE_N) targets (int8 in HBM)

    # Numerically stable log-softmax pieces over the class (sublane) axis.
    m = jnp.max(x, axis=0, keepdims=True)                 # (1, TILE_N)
    z = x - m                                             # (C, TILE_N)
    ez = jnp.exp(z)                                       # (C, TILE_N), reused
    sum_ez = jnp.sum(ez, axis=0, keepdims=True)           # (1, TILE_N)
    lse = jnp.log(sum_ez)                                 # (1, TILE_N)

    # Gather z / exp(z) at the target class with one-hot selects
    # (no dynamic gather on TPU).
    cls_idx = jax.lax.broadcasted_iota(jnp.int32, x.shape, 0)
    onehot = cls_idx == t
    z_t = jnp.sum(jnp.where(onehot, z, 0.0), axis=0, keepdims=True)
    ez_t = jnp.sum(jnp.where(onehot, ez, 0.0), axis=0, keepdims=True)

    logpt = jnp.minimum(z_t - lse, 0.0)     # clamp: logpt <= 0  => pt <= 1

    # pt = exp(z_t) / sum(exp(z)) without a second exp: cheap EUP approximate
    # reciprocal, then two Newton-Raphson refinements on the VPU to recover
    # ~f32 accuracy.
    r = pl.reciprocal(sum_ez, approx=True)
    r = r * (2.0 - sum_ez * r)
    r = r * (2.0 - sum_ez * r)
    pt = ez_t * r
    omp = jnp.maximum(1.0 - pt, 0.0)        # (1 - pt), clamped >= 0

    # Specialize the focal weight at trace time (gamma is a Python float).
    g = float(gamma)
    if g == 2.0:
        w = omp * omp                       # one VPU multiply, no EUP pow
    elif g == 1.0:
        w = omp
    elif g == 0.0:
        w = jnp.ones_like(omp)
    elif g.is_integer() and g > 0:
        w = omp
        for _ in range(int(g) - 1):
            w = w * omp
    else:
        w = jnp.power(omp, g)

    balanced = (-alpha) * w * logpt         # (1, TILE_N) per-sample loss

    # Mask lanes past the end of the data (ragged last tile / overshoot tiles
    # of the last chunk).  Keep this a select (jnp.where) so inf/NaN garbage in
    # the unread tail of the VMEM buffer can never reach the accumulator.
    g_tile = i * tiles_per_chunk + j
    samp = jax.lax.broadcasted_iota(jnp.int32, (1, tile_n), 1) + g_tile * tile_n
    acc_ref[...] += jnp.where(samp < n_samples, balanced, 0.0)

    # Per-chunk epilogue: single cross-lane reduce, write the partial into
    # lane 0 of this chunk's lane-dense (1, 128) output block.
    @pl.when(j == pl.num_programs(1) - 1)
    def _():
        total = jnp.sum(acc_ref[...])
        lane = jax.lax.broadcasted_iota(jnp.int32, (1, 128), 1)
        out_ref[...] = jnp.where(lane == 0, total, 0.0)


def focal_loss_class_major(logits_cn, targets, alpha=0.25, gamma=2.0,
                           tile_n=32768, num_chunks=2):
    """Focal loss from class-major logits.

    logits_cn: (C, N) float logits (classes on sublanes, samples on lanes).
    targets:   (N,) integer class indices.
    """
    c, n = logits_cn.shape
    t_row = targets.reshape(1, n).astype(jnp.int8)   # C <= 127 -> 1/4 HBM bytes

    # Lane tile: big enough to amortize per-step overhead, multiple of 128,
    # never larger than the (lane-rounded) data extent.
    tile = min(_round_up(max(int(tile_n), 128), 128), _round_up(n, 128))
    n_tiles = pl.cdiv(n, tile)
    n_chunks = max(1, min(int(num_chunks), n_tiles))
    tpc = pl.cdiv(n_tiles, n_chunks)        # tiles per parallel chunk
    last_tile = n_tiles - 1

    # Clamp the global tile index so overshoot grid points of the last chunk
    # re-read the last in-bounds tile (their lanes are fully masked in-kernel).
    def x_map(i, j):
        return (0, jnp.minimum(i * tpc + j, last_tile))

    def t_map(i, j):
        return (0, jnp.minimum(i * tpc + j, last_tile))

    kernel = functools.partial(
        _focal_loss_kernel,
        alpha=float(alpha), gamma=float(gamma),
        n_samples=n, tile_n=tile, tiles_per_chunk=tpc,
    )

    cost = pl.CostEstimate(
        flops=12 * n * c,
        transcendentals=n * (c + 2),     # exp per class + log + reciprocal
        bytes_accessed=n * c * logits_cn.dtype.itemsize + n + 512 * n_chunks,
    )

    partials = pl.pallas_call(
        kernel,
        out_shape=jax.ShapeDtypeStruct((1, 128 * n_chunks), jnp.float32),
        grid=(n_chunks, tpc),
        in_specs=[
            pl.BlockSpec((c, tile), x_map),       # (C, TILE_N) logits
            pl.BlockSpec((1, tile), t_map),       # (1, TILE_N) int8 targets
        ],
        out_specs=pl.BlockSpec((1, 128), lambda i, j: (0, i)),
        scratch_shapes=[pltpu.VMEM((1, tile), jnp.float32)],   # lane-vector acc
        compiler_params=pltpu.CompilerParams(
            dimension_semantics=("parallel", "arbitrary"),
        ),
        cost_estimate=cost,
    )(logits_cn, t_row)

    return jnp.sum(partials) / jnp.float32(n)


def focal_loss(inputs, targets, alpha=0.25, gamma=2.0,
               tile_n=32768, num_chunks=2):
    """PyTorch-compatible entry point: inputs (N, C) logits, targets (N,) ints.

    NOTE: the (N, C) -> (C, N) relayout below is a separate XLA transpose that
    re-reads/re-writes every logit; if the producer can emit class-major
    logits, call focal_loss_class_major directly and skip it entirely.
    """
    return focal_loss_class_major(inputs.T, targets, alpha=alpha, gamma=gamma,
                                  tile_n=tile_n, num_chunks=num_chunks)


def _focal_loss_ref(inputs, targets, alpha=0.25, gamma=2.0):
    logp = jax.nn.log_softmax(inputs, axis=1)
    logpt = jnp.take_along_axis(logp, targets.reshape(-1, 1), axis=1).reshape(-1)
    pt = jnp.exp(logpt)
    fl = -1.0 * (1.0 - pt) ** gamma * logpt
    return jnp.mean(alpha * fl)


if __name__ == "__main__":
    key = jax.random.PRNGKey(0)
    k1, k2, k3, k4 = jax.random.split(key, 4)

    # Small shape consistent with the module (N samples, C=10 classes).
    N, C = 8, 10
    inputs = jax.random.normal(k1, (N, C), dtype=jnp.float32)
    targets = jax.random.randint(k2, (N,), 0, C, dtype=jnp.int32)

    loss = focal_loss(inputs, targets)
    jax.block_until_ready(loss)
    ref = _focal_loss_ref(inputs, targets)
    assert jnp.allclose(loss, ref, atol=1e-5, rtol=1e-5), (loss, ref)

    # Second case: ragged multi-tile path + both parallel chunks exercised.
    N2, C2 = 1000, 10
    inputs2 = jax.random.normal(k3, (N2, C2), dtype=jnp.float32)
    targets2 = jax.random.randint(k4, (N2,), 0, C2, dtype=jnp.int32)

    loss2 = focal_loss(inputs2, targets2, tile_n=256, num_chunks=2)
    jax.block_until_ready(loss2)
    ref2 = _focal_loss_ref(inputs2, targets2)
    assert jnp.allclose(loss2, ref2, atol=1e-5, rtol=1e-5), (loss2, ref2)

    print("KERNEL_OK")
</pallas_src>

<mosaic_0001>
module attributes {stable_mosaic.version = 11 : i64} {
  func.func @_focal_loss_kernel(%arg0: i32, %arg1: i32, %arg2: memref<10x128xf32, #tpu.memory_space<vmem>>, %arg3: memref<1x128xi8, #tpu.memory_space<vmem>>, %arg4: memref<1x128xf32, #tpu.memory_space<vmem>>, %arg5: memref<1x128xf32, #tpu.memory_space<vmem>>) attributes {dimension_semantics = [#tpu.dimension_semantics<parallel>, #tpu.dimension_semantics<arbitrary>], iteration_bounds = array<i64: 1, 1>, scalar_prefetch = 0 : i64, scratch_operands = 1 : i64, tpu.core_type = #tpu.core_type<tc>, window_params = [{transform_indices = @transform_0, window_bounds = array<i64: 10, 128>}, {transform_indices = @transform_1, window_bounds = array<i64: 1, 128>}, {transform_indices = @transform_2, window_bounds = array<i64: 1, 128>}]} {
    %c0_i32 = arith.constant 0 : i32
    %0 = arith.cmpi eq, %arg1, %c0_i32 : i32
    %1 = arith.extui %0 : i1 to i32
    %c0_i32_0 = arith.constant 0 : i32
    %2 = arith.cmpi ne, %1, %c0_i32_0 : i32
    scf.if %2 {
      %cst_22 = arith.constant 0.000000e+00 : f32
      %62 = vector.broadcast %cst_22 : f32 to vector<1x128xf32>
      %c0_23 = arith.constant 0 : index
      %c0_24 = arith.constant 0 : index
      %63 = vector.load %arg5[%c0_23, %c0_24] : memref<1x128xf32, #tpu.memory_space<vmem>>, vector<1x128xf32>
      tpu.vector_store %arg5[%c0_23, %c0_24], %62 {strides = array<i32>} : memref<1x128xf32, #tpu.memory_space<vmem>>, vector<1x128xf32>,
    } else {
    }
    %c0 = arith.constant 0 : index
    %c0_1 = arith.constant 0 : index
    %3 = vector.load %arg2[%c0, %c0_1] : memref<10x128xf32, #tpu.memory_space<vmem>>, vector<10x128xf32>
    %c0_2 = arith.constant 0 : index
    %c0_3 = arith.constant 0 : index
    %4 = vector.load %arg3[%c0_2, %c0_3] : memref<1x128xi8, #tpu.memory_space<vmem>>, vector<1x128xi8>
    %5 = arith.extsi %4 : vector<1x128xi8> to vector<1x128xi32>
    %cst = arith.constant dense<0xFF800000> : vector<128xf32>
    %6 = vector.multi_reduction <maximumf>, %3, %cst [0] : vector<10x128xf32> to vector<128xf32>
    %7 = vector.shape_cast %6 : vector<128xf32> to vector<1x128xf32>
    %8 = vector.broadcast %7 : vector<1x128xf32> to vector<10x128xf32>
    %9 = arith.subf %3, %8 : vector<10x128xf32>
    %10 = math.exp %9 : vector<10x128xf32>
    %cst_4 = arith.constant dense<0.000000e+00> : vector<128xf32>
    %11 = vector.multi_reduction <add>, %10, %cst_4 [0] : vector<10x128xf32> to vector<128xf32>
    %12 = vector.shape_cast %11 : vector<128xf32> to vector<1x128xf32>
    %13 = math.log %12 : vector<1x128xf32>
    %14 = tpu.iota {dimensions = array<i32: 0>} : vector<10x128xi32>
    %15 = vector.broadcast %5 : vector<1x128xi32> to vector<10x128xi32>
    %16 = arith.cmpi eq, %14, %15 : vector<10x128xi32>
    %cst_5 = arith.constant 0.000000e+00 : f32
    %17 = vector.broadcast %cst_5 : f32 to vector<10x128xf32>
    %18 = arith.select %16, %9, %17 : vector<10x128xi1>, vector<10x128xf32>
    %cst_6 = arith.constant dense<0.000000e+00> : vector<128xf32>
    %19 = vector.multi_reduction <add>, %18, %cst_6 [0] : vector<10x128xf32> to vector<128xf32>
    %20 = vector.shape_cast %19 : vector<128xf32> to vector<1x128xf32>
    %cst_7 = arith.constant 0.000000e+00 : f32
    %21 = vector.broadcast %cst_7 : f32 to vector<10x128xf32>
    %22 = arith.select %16, %10, %21 : vector<10x128xi1>, vector<10x128xf32>
    %cst_8 = arith.constant dense<0.000000e+00> : vector<128xf32>
    %23 = vector.multi_reduction <add>, %22, %cst_8 [0] : vector<10x128xf32> to vector<128xf32>
    %24 = vector.shape_cast %23 : vector<128xf32> to vector<1x128xf32>
    %25 = arith.subf %20, %13 : vector<1x128xf32>
    %cst_9 = arith.constant 0.000000e+00 : f32
    %26 = vector.broadcast %cst_9 : f32 to vector<1x128xf32>
    %27 = arith.minimumf %25, %26 : vector<1x128xf32>
    %28 = tpu.reciprocal %12 {approx = true} : vector<1x128xf32> -> vector<1x128xf32>
    %29 = arith.mulf %12, %28 : vector<1x128xf32>
    %cst_10 = arith.constant 2.000000e+00 : f32
    %30 = vector.broadcast %cst_10 : f32 to vector<1x128xf32>
    %31 = arith.subf %30, %29 : vector<1x128xf32>
    %32 = arith.mulf %28, %31 : vector<1x128xf32>
    %33 = arith.mulf %12, %32 : vector<1x128xf32>
    %cst_11 = arith.constant 2.000000e+00 : f32
    %34 = vector.broadcast %cst_11 : f32 to vector<1x128xf32>
    %35 = arith.subf %34, %33 : vector<1x128xf32>
    %36 = arith.mulf %32, %35 : vector<1x128xf32>
    %37 = arith.mulf %24, %36 : vector<1x128xf32>
    %cst_12 = arith.constant 1.000000e+00 : f32
    %38 = vector.broadcast %cst_12 : f32 to vector<1x128xf32>
    %39 = arith.subf %38, %37 : vector<1x128xf32>
    %cst_13 = arith.constant 0.000000e+00 : f32
    %40 = vector.broadcast %cst_13 : f32 to vector<1x128xf32>
    %41 = arith.maximumf %39, %40 : vector<1x128xf32>
    %42 = arith.mulf %41, %41 : vector<1x128xf32>
    %cst_14 = arith.constant -2.500000e-01 : f32
    %43 = vector.broadcast %cst_14 : f32 to vector<1x128xf32>
    %44 = arith.mulf %43, %42 : vector<1x128xf32>
    %45 = arith.mulf %44, %27 : vector<1x128xf32>
    %c1_i32 = arith.constant 1 : i32
    %46 = arith.muli %arg0, %c1_i32 : i32
    %47 = arith.addi %46, %arg1 : i32
    %48 = tpu.iota {dimensions = array<i32: 1>} : vector<1x128xi32>
    %c128_i32 = arith.constant 128 : i32
    %49 = arith.muli %47, %c128_i32 : i32
    %50 = vector.broadcast %49 : i32 to vector<1x128xi32>
    %51 = arith.addi %48, %50 : vector<1x128xi32>
    %c0_15 = arith.constant 0 : index
    %c0_16 = arith.constant 0 : index
    %52 = vector.load %arg5[%c0_15, %c0_16] : memref<1x128xf32, #tpu.memory_space<vmem>>, vector<1x128xf32>
    %c8_i32 = arith.constant 8 : i32
    %53 = vector.broadcast %c8_i32 : i32 to vector<1x128xi32>
    %54 = arith.cmpi slt, %51, %53 : vector<1x128xi32>
    %cst_17 = arith.constant 0.000000e+00 : f32
    %55 = vector.broadcast %cst_17 : f32 to vector<1x128xf32>
    %56 = arith.select %54, %45, %55 : vector<1x128xi1>, vector<1x128xf32>
    %57 = arith.addf %52, %56 : vector<1x128xf32>
    %c0_18 = arith.constant 0 : index
    %c0_19 = arith.constant 0 : index
    %58 = vector.load %arg5[%c0_18, %c0_19] : memref<1x128xf32, #tpu.memory_space<vmem>>, vector<1x128xf32>
    tpu.vector_store %arg5[%c0_18, %c0_19], %57 {strides = array<i32>} : memref<1x128xf32, #tpu.memory_space<vmem>>, vector<1x128xf32>,
    %c0_i32_20 = arith.constant 0 : i32
    %59 = arith.cmpi eq, %arg1, %c0_i32_20 : i32
    %60 = arith.extui %59 : i1 to i32
    %c0_i32_21 = arith.constant 0 : i32
    %61 = arith.cmpi ne, %60, %c0_i32_21 : i32
    scf.if %61 {
      %c0_22 = arith.constant 0 : index
      %c0_23 = arith.constant 0 : index
      %62 = vector.load %arg5[%c0_22, %c0_23] : memref<1x128xf32, #tpu.memory_space<vmem>>, vector<1x128xf32>
      %63 = vector.shape_cast %62 : vector<1x128xf32> to vector<1x1x128xf32>
      %cst_24 = arith.constant dense<0.000000e+00> : vector<1xf32>
      %64 = vector.multi_reduction <add>, %63, %cst_24 [1, 2] : vector<1x1x128xf32> to vector<1xf32>
      %65 = vector.shape_cast %64 : vector<1xf32> to vector<1x1x1xf32>
      %66 = vector.extract %65[0, 0, 0] : f32 from vector<1x1x1xf32>
      %67 = tpu.iota {dimensions = array<i32: 1>} : vector<1x128xi32>
      %c0_i32_25 = arith.constant 0 : i32
      %68 = vector.broadcast %c0_i32_25 : i32 to vector<1x128xi32>
      %69 = arith.cmpi eq, %67, %68 : vector<1x128xi32>
      %cst_26 = arith.constant 0.000000e+00 : f32
      %70 = vector.broadcast %66 : f32 to vector<1x128xf32>
      %71 = vector.broadcast %cst_26 : f32 to vector<1x128xf32>
      %72 = arith.select %69, %70, %71 : vector<1x128xi1>, vector<1x128xf32>
      %c0_27 = arith.constant 0 : index
      %c0_28 = arith.constant 0 : index
      %73 = vector.load %arg4[%c0_27, %c0_28] : memref<1x128xf32, #tpu.memory_space<vmem>>, vector<1x128xf32>
      tpu.vector_store %arg4[%c0_27, %c0_28], %72 {strides = array<i32>} : memref<1x128xf32, #tpu.memory_space<vmem>>, vector<1x128xf32>,
    } else {
    }
    return
  }
  func.func @transform_0(%arg0: i32, %arg1: i32) -> (i32, i32) {
    %c1_i32 = arith.constant 1 : i32
    %0 = arith.muli %arg0, %c1_i32 : i32
    %1 = arith.addi %0, %arg1 : i32
    %c0_i32 = arith.constant 0 : i32
    %2 = arith.minsi %1, %c0_i32 : i32
    %c0_i32_0 = arith.constant 0 : i32
    %c0_i32_1 = arith.constant 0 : i32
    return %c0_i32_0, %2 : i32, i32
  }
  func.func @transform_1(%arg0: i32, %arg1: i32) -> (i32, i32) {
    %c1_i32 = arith.constant 1 : i32
    %0 = arith.muli %arg0, %c1_i32 : i32
    %1 = arith.addi %0, %arg1 : i32
    %c0_i32 = arith.constant 0 : i32
    %2 = arith.minsi %1, %c0_i32 : i32
    %c0_i32_0 = arith.constant 0 : i32
    %c0_i32_1 = arith.constant 0 : i32
    return %c0_i32_0, %2 : i32, i32
  }
  func.func @transform_2(%arg0: i32, %arg1: i32) -> (i32, i32) {
    %c0_i32 = arith.constant 0 : i32
    %c0_i32_0 = arith.constant 0 : i32
    return %c0_i32, %arg0 : i32, i32
  }
}

</mosaic_0001>

<llo_original>
// kernel: tpu_custom_call.1
$region0: #{tpu_custom_call.1}
  #allocation0 [shape = 'u32[]', space=smem, size = 0x4, offset = 0x4, fixed_abs, tag = 'smem constant byte address 0x4 - core index']
  #allocation1 [shape = 'u32[72,128]{1,0:T(1,128)}', space=vmem, size = 0x9000, scoped, tag = 'internal scratch']
  #allocation2 [shape = 'f32[1,128]{1,0:T(1,128)}', space=vmem, size = 0x200, scoped, tag = 'scratch operand']
  %s0 = inlined_call_operand.vmem [shape: f32[10,8], index: 0, kind: input, shape index: {}]
  %s1 = inlined_call_operand.vmem [shape: s8[1,8], index: 1, kind: input, shape index: {}]
  %s2 = inlined_call_operand.hbm [shape: f32[1,128], index: 2, kind: output, shape index: {}]
  %s3 = sld [smem:[#allocation0]]
  $region26: #{tpu_custom_call.1} parent=0
    _
  %s5 = ssub.s32 1, %s3
  %s6 = scalar_select 0, %s5, %s3
  $region1: #{tpu_custom_call.1} parent=0
    #allocation3 [shape = 'u8[512]{0}', space=vmem, size = 0x400, scoped, tag = 'output window, operand 0, single buffered']
    #allocation4 [shape = 's32[1]{0}', space=sflag, size = 0x4, scoped, tag = 'scoped memory for tpu_custom_call.1']
    %7 = vsyncpa [#allocation4], 0
    // Predicated region
    $region2: #{tpu_custom_call.1} parent=1 // pred_check
      _
    $region3: #{tpu_custom_call.1} parent=1 // pred_check_branch
      %9 = sbr.rel (0) target = $region5
    $region4: #{tpu_custom_call.1} parent=1 // pred_region
      %s10 = sadd.s32 0, 0
      %p11 = scmp.lt.s32.totalorder %s10, 0
      %s12 = scalar_select %p11, %s10, 0
      %p13 = scmp.lt.s32.totalorder %s12, 0
      %s14 = scalar_select %p13, %s12, 0
      %s15 = smul.addr %s14, 8
      %s16 = scalar_lea.vmem %s0, %s15
      %s17 = sadd.s32 0, 0
      %p18 = scmp.lt.s32.totalorder %s17, 0
      %s19 = scalar_select %p18, %s17, 0
    $region5: #{tpu_custom_call.1} parent=1 // pred_fallthru
      _
    // Predicated region
    $region6: #{tpu_custom_call.1} parent=1 // pred_check
      _
    $region7: #{tpu_custom_call.1} parent=1 // pred_check_branch
      %21 = sbr.rel (0) target = $region9
    $region8: #{tpu_custom_call.1} parent=1 // pred_region
      %s22 = sadd.s32 0, 0
      %p23 = scmp.lt.s32.totalorder %s22, 0
      %s24 = scalar_select %p23, %s22, 0
      %p25 = scmp.lt.s32.totalorder %s24, 0
      %s26 = scalar_select %p25, %s24, 0
      %s27 = scalar_lea.vmem %s1, %s26
      %s28 = sadd.s32 0, 0
      %p29 = scmp.lt.s32.totalorder %s28, 0
      %s30 = scalar_select %p29, %s28, 0
    $region9: #{tpu_custom_call.1} parent=1 // pred_fallthru
      _
    %s31 = sadd.s32 0, 0
    %p32 = scmp.lt.s32.totalorder %s31, 0
    %s33 = scalar_select %p32, %s31, 0
    %p34 = scmp.lt.s32.totalorder %s33, 0
    %s35 = scalar_select %p34, %s33, 0
    %s36 = smul.addr %s35, 8
    %s37 = scalar_lea.vmem %s0, %s36
    %s38 = sadd.s32 0, 0
    %p39 = scmp.lt.s32.totalorder %s38, 0
    %s40 = scalar_select %p39, %s38, 0
    %p41 = scmp.lt.s32.totalorder %s40, 0
    %s42 = scalar_select %p41, %s40, 0
    %s43 = scalar_lea.vmem %s1, %s42
    %s44 = sadd.s32 0, 0
    %p45 = scmp.lt.s32.totalorder %s44, 0
    %s46 = scalar_select %p45, %s44, 0
    %p47 = scmp.lt.s32.totalorder %s46, 0
    %s48 = scalar_select %p47, %s46, 0
    %s49 = smul.addr %s48, 8
    %s50 = scalar_lea.vmem %s0, %s49
    %s51 = sadd.s32 0, 0
    %p52 = scmp.lt.s32.totalorder %s51, 0
    %s53 = scalar_select %p52, %s51, 0
    %s54 = sadd.s32 0, 0
    %p55 = scmp.lt.s32.totalorder %s54, 0
    %s56 = scalar_select %p55, %s54, 0
    %p57 = scmp.lt.s32.totalorder %s56, 0
    %s58 = scalar_select %p57, %s56, 0
    %s59 = scalar_lea.vmem %s1, %s58
    %s60 = sadd.s32 0, 0
    %p61 = scmp.lt.s32.totalorder %s60, 0
    %s62 = scalar_select %p61, %s60, 0
    %p63 = scmp.eq.s32.totalorder 0, 0
    // Predicated region
    $region10: #{tpu_custom_call.1} parent=1 // pred_check
      %p64 = pneg %p63
    $region11: #{tpu_custom_call.1} parent=1 // pred_check_branch
      %66 = sbr.rel (%p64) target = $region13
    $region12: #{tpu_custom_call.1} parent=1 // pred_region
      %67 = vst [vmem:[#allocation2] sm:$0x1] 0.0
    $region13: #{tpu_custom_call.1} parent=1 // pred_fallthru
      _
    %v68 = vld [vmem:[%s50] sm:$0xff]
    %v69 = vld [vmem:[%s50 + $0x8] sm:$0x3]
    %v70 = vld [vmem:[%s59] sm:$0x1]
    %v71 = vunpack.c.0.s8 %v70
    %vm72 = vcmask 1041408
    %v73 = vsel %vm72, %v69, -inf
    %v74 = vmax.f32 %v68, %v73
    %v75 = vrot.slane %v74, 4
    %v76 = vmax.f32 %v74, %v75
    %v77 = vrot.slane %v76, 2
    %v78 = vmax.f32 %v76, %v77
    %v79 = vrot.slane %v78, 1
    %v80 = vmax.f32 %v78, %v79
    %v81 = vsub.f32 %v68, %v80
    %v82 = vsub.f32 %v69, %v80
    %v83 = vmul.f32 %v81, 1.442695
    %v84 = vpow.pop %v83
    %v85 = vmul.f32 %v82, 1.442695
    %v86 = vpow.pop %v85
    %v87 = vsel %vm72, %v86, 0.0
    %v88 = vadd.f32 %v84, %v87
    %v89 = vrot.slane %v88, 4
    %v90 = vadd.f32 %v88, %v89
    %v91 = vrot.slane %v90, 2
    %v92 = vadd.f32 %v90, %v91
    %v93 = vrot.slane %v92, 1
    %v94 = vadd.f32 %v92, %v93
    %v95 = vlog2.pop %v94
    %v96 = vmul.f32 %v95, 0.6931472
    %v97 = vlaneseq
    %v98 = vshrl.u32 %v97, 7
    %v99 = vadd.s32 %v98, 8
    %v100 = vperm.slane %v71, 0
    %vm101 = vcmp.eq.s32.totalorder %v98, %v100
    %vm102 = vcmp.eq.s32.totalorder %v99, %v100
    %v103 = vsel %vm101, %v81, 0.0
    %v104 = vsel %vm102, %v82, 0.0
    %v105 = vsel %vm72, %v104, 0.0
    %v106 = vadd.f32 %v103, %v105
    %v107 = vrot.slane %v106, 4
    %v108 = vadd.f32 %v106, %v107
    %v109 = vrot.slane %v108, 2
    %v110 = vadd.f32 %v108, %v109
    %v111 = vrot.slane %v110, 1
    %v112 = vadd.f32 %v110, %v111
    %v113 = vsel %vm101, %v84, 0.0
    %v114 = vsel %vm102, %v86, 0.0
    %v115 = vsel %vm72, %v114, 0.0
    %v116 = vadd.f32 %v113, %v115
    %v117 = vrot.slane %v116, 4
    %v118 = vadd.f32 %v116, %v117
    %v119 = vrot.slane %v118, 2
    %v120 = vadd.f32 %v118, %v119
    %v121 = vrot.slane %v120, 1
    %v122 = vadd.f32 %v120, %v121
    %v123 = vsub.f32 %v112, %v96
    %v124 = vmin.f32 %v123, 0.0
    %v125 = vrcp.pop %v94
    %v126 = vmul.f32 %v94, %v125
    %v127 = vsub.f32 2.0, %v126
    %v128 = vmul.f32 %v125, %v127
    %v129 = vmul.f32 %v94, %v128
    %v130 = vsub.f32 2.0, %v129
    %v131 = vmul.f32 %v128, %v130
    %v132 = vmul.f32 %v122, %v131
    %v133 = vsub.f32 1.0, %v132
    %v134 = vmax.f32 %v133, 0.0
    %v135 = vmul.f32 %v134, %v134
    %v136 = vmul.f32 %v135, -0.25
    %v137 = vmul.f32 %v136, %v124
    %s138 = sadd.s32 0, 0
    %v139 = vlaneseq
    %v140 = vand.u32 %v139, 127
    %s141 = smul.u32 %s138, 128
    %v142 = vstv %s141
    %v143 = vadd.s32 %v140, %v142
    %v144 = vld [vmem:[#allocation2] sm:$0x1]
    %vm145 = vcmp.lt.s32.totalorder %v143, 8
    %v146 = vsel %vm145, %v137, 0.0
    %v147 = vadd.f32 %v144, %v146
    %148 = vst [vmem:[#allocation2] sm:$0x1] %v147
    // Predicated region
    $region14: #{tpu_custom_call.1} parent=1 // pred_check
      %p149 = pneg %p63
    $region15: #{tpu_custom_call.1} parent=1 // pred_check_branch
      %151 = sbr.rel (%p149) target = $region17
    $region16: #{tpu_custom_call.1} parent=1 // pred_region
      %v152 = vld [vmem:[#allocation2] sm:$0x1]
      %vm153 = vcmask 1040384
      %v154 = vsel %vm153, %v152, 0.0
      %155 = vadd.xlane.f32.xlu0 %v154
      %v156 = vpop.xlane.xlu0 %155
      %v157 = vrot.slane %v156, 4
      %v158 = vadd.f32 %v156, %v157
      %v159 = vrot.slane %v158, 2
      %v160 = vadd.f32 %v158, %v159
      %v161 = vrot.slane %v160, 1
      %v162 = vadd.f32 %v160, %v161
      %s163 = vtos %v162
      %vm164 = vcmp.eq.s32.totalorder %v140, 0
      %v165 = vstv %s163
      %v166 = vsel %vm164, %v165, 0.0
      %167 = vst [vmem:[#allocation3] sm:$0x1] %v166
    $region17: #{tpu_custom_call.1} parent=1 // pred_fallthru
      _
    // Predicated region
    $region18: #{tpu_custom_call.1} parent=1 // pred_check
      _
    $region19: #{tpu_custom_call.1} parent=1 // pred_check_branch
      %169 = sbr.rel (0) target = $region21
    $region20: #{tpu_custom_call.1} parent=1 // pred_region
      %171 = vsyncadd [#allocation4], 0
      %s173 = sshll.u32 [#allocation3], 4
      %s174 = int_to_ptr.vmem [resolvable:$true] %s173
      %s175 = sshll.u32 %s2, 4
      %s176 = int_to_ptr.hbm [resolvable:$true] %s175
      %178 = dma.vmem_to_hbm [thread:$0]  %s174, 16, %s176, [#allocation4]
    $region21: #{tpu_custom_call.1} parent=1 // pred_fallthru
      _
    // Predicated region
    $region22: #{tpu_custom_call.1} parent=1 // pred_check
      _
    $region23: #{tpu_custom_call.1} parent=1 // pred_check_branch
      %180 = sbr.rel (0) target = $region25
    $region24: #{tpu_custom_call.1} parent=1 // pred_region
      %182 = dma.done [#allocation4], 16
    $region25: #{tpu_custom_call.1} parent=1 // pred_fallthru
      _
    %183 = vsyncpa [#allocation4], 1

</llo_original>
